<compile_context>
chip_gen: v5e
topology: v5e:2x2
jax: 0.10.0
libtpu: 0.0.40
codegen_flags: <defaults>
</compile_context>

<pallas_src>
import jax
import jax.numpy as jnp
from jax.experimental import pallas as pl
from jax.experimental.pallas import tpu as pltpu

_LANE = 128
_MAX_COLS = 16384                 # lane-dense target; large multiple of 128
_BLOCK_BUDGET_BYTES = 2 << 20     # ~2 MiB per tile; x4 buffers = 8 MiB VMEM


def _identity_kernel(x_ref, o_ref):
    # Pure identity: VMEM tile copy (vld/vst stream, memory bound).
    o_ref[...] = x_ref[...]


def _sublane(dtype) -> int:
    # Native sublane packing: f32 -> 8 rows/vreg, bf16 -> 16, int8/fp8 -> 32.
    return max(8, 32 // jnp.dtype(dtype).itemsize)


def _pick_cols(n: int) -> int:
    """Largest 128*2^j divisor of n, capped at _MAX_COLS. 0 if n % 128 != 0."""
    if n % _LANE != 0:
        return 0
    cols = _LANE
    while cols * 2 <= _MAX_COLS and n % (cols * 2) == 0:
        cols *= 2
    return cols


def _copy_2d(x2d):
    rows, cols = x2d.shape
    sub = _sublane(x2d.dtype)
    itemsize = jnp.dtype(x2d.dtype).itemsize
    # Largest sublane-aligned row count that keeps the tile under the budget.
    max_rows = max(sub, (_BLOCK_BUDGET_BYTES // (cols * itemsize)) // sub * sub)
    if rows <= max_rows:
        tile_rows = rows           # block dim == full array dim: always legal
    else:
        tile_rows = max_rows       # multiple of the sublane packing
    grid = (pl.cdiv(rows, tile_rows),)

    return pl.pallas_call(
        _identity_kernel,
        out_shape=jax.ShapeDtypeStruct((rows, cols), x2d.dtype),
        grid_spec=pltpu.PrefetchScalarGridSpec(
            num_scalar_prefetch=0,
            grid=grid,
            in_specs=[pl.BlockSpec((tile_rows, cols), lambda i: (i, 0))],
            out_specs=pl.BlockSpec((tile_rows, cols), lambda i: (i, 0)),
        ),
        compiler_params=pltpu.CompilerParams(
            dimension_semantics=("parallel",),
        ),
        input_output_aliases={0: 0},
    )(x2d)


@jax.jit
def dummy_forward(x):
    """Identity forward of `Dummy` (pure passthrough) via a Pallas copy kernel."""
    if x.size == 0:
        return x  # guard: no zero-row pallas_call

    n = x.size
    cols = _pick_cols(n)
    if cols:
        # Common case: contiguous flatten/factor is metadata-only (no pad, no slice).
        x2d = x.reshape(n // cols, cols)
        out2d = _copy_2d(x2d)
        return out2d.reshape(x.shape)

    # Fallback for sizes not divisible by 128: pad a small 2D slab, then slice.
    # TODO(synk): could use a masked tail block instead of padding for huge odd sizes.
    sub = _sublane(x.dtype)
    rows = pl.cdiv(pl.cdiv(n, _LANE), sub) * sub
    flat = jnp.pad(x.reshape(-1), (0, rows * _LANE - n))
    out = _copy_2d(flat.reshape(rows, _LANE))
    return out.reshape(-1)[:n].reshape(x.shape)


if __name__ == "__main__":
    key = jax.random.PRNGKey(0)

    # Small NCHW-shaped input consistent with a vision feature map (lane-dense path).
    x = jax.random.normal(key, (2, 4, 16, 16), dtype=jnp.float32)
    y = dummy_forward(x)
    jax.block_until_ready(y)
    assert y.shape == x.shape and y.dtype == x.dtype
    assert bool(jnp.all(y == x))

    # Odd-sized input exercising the padded fallback path.
    x2 = jax.random.normal(jax.random.PRNGKey(1), (3, 5, 7), dtype=jnp.float32)
    y2 = dummy_forward(x2)
    jax.block_until_ready(y2)
    assert y2.shape == x2.shape and y2.dtype == x2.dtype
    assert bool(jnp.all(y2 == x2))

    print("KERNEL_OK")
</pallas_src>

<mosaic_0001>
module attributes {stable_mosaic.version = 11 : i64} {
  func.func @_identity_kernel(%arg0: i32, %arg1: memref<1x2048xf32, #tpu.memory_space<vmem>>, %arg2: memref<1x2048xf32, #tpu.memory_space<vmem>>) attributes {dimension_semantics = [#tpu.dimension_semantics<parallel>], iteration_bounds = array<i64: 1>, scalar_prefetch = 0 : i64, scratch_operands = 0 : i64, tpu.core_type = #tpu.core_type<tc>, window_params = [{transform_indices = @transform_0, window_bounds = array<i64: 1, 2048>}, {transform_indices = @transform_1, window_bounds = array<i64: 1, 2048>}]} {
    %c0 = arith.constant 0 : index
    %c0_0 = arith.constant 0 : index
    %0 = vector.load %arg1[%c0, %c0_0] : memref<1x2048xf32, #tpu.memory_space<vmem>>, vector<1x2048xf32>
    %c0_1 = arith.constant 0 : index
    %c0_2 = arith.constant 0 : index
    %1 = vector.load %arg2[%c0_1, %c0_2] : memref<1x2048xf32, #tpu.memory_space<vmem>>, vector<1x2048xf32>
    tpu.vector_store %arg2[%c0_1, %c0_2], %0 {strides = array<i32>} : memref<1x2048xf32, #tpu.memory_space<vmem>>, vector<1x2048xf32>,
    return
  }
  func.func @transform_0(%arg0: i32) -> (i32, i32) {
    %c0_i32 = arith.constant 0 : i32
    %c0_i32_0 = arith.constant 0 : i32
    return %arg0, %c0_i32 : i32, i32
  }
  func.func @transform_1(%arg0: i32) -> (i32, i32) {
    %c0_i32 = arith.constant 0 : i32
    %c0_i32_0 = arith.constant 0 : i32
    return %arg0, %c0_i32 : i32, i32
  }
}

</mosaic_0001>

<llo_original>
// kernel: dummy_forward.1
$region0: #{dummy_forward.1}
  #allocation0 [shape = 'u32[]', space=smem, size = 0x4, offset = 0x4, fixed_abs, tag = 'smem constant byte address 0x4 - core index']
  #allocation1 [shape = 'u32[72,128]{1,0:T(1,128)}', space=vmem, size = 0x9000, scoped, tag = 'internal scratch']
  %s0 = inlined_call_operand.vmem [shape: f32[1,2048], index: 0, kind: input, shape index: {}, may-alias: {0,1}]
  %s1 = inlined_call_operand.vmem [shape: f32[1,2048], index: 1, kind: output, shape index: {}, may-alias: {0,1}]
  %s2 = sld [smem:[#allocation0]]
  $region14: #{dummy_forward.1} parent=0
    _
  %s4 = ssub.s32 1, %s2
  %s5 = scalar_select 0, %s4, %s2
  // Predicated region
  $region2: #{dummy_forward.1} parent=0 // pred_check
    _
  $region3: #{dummy_forward.1} parent=0 // pred_check_branch
    %7 = sbr.rel (0) target = $region5
  $region4: #{dummy_forward.1} parent=0 // pred_region
    _
  $region5: #{dummy_forward.1} parent=0 // pred_fallthru
    _
  %v8 = vld [vmem:[%s0] sm:$0xff]
  %v9 = vld [vmem:[%s0 + $0x8] sm:$0xff]
  %10 = vst [vmem:[%s1] sm:$0xff] %v8
  %11 = vst [vmem:[%s1 + $0x8] sm:$0xff] %v9
  // Predicated region
  $region6: #{dummy_forward.1} parent=0 // pred_check
    _
  $region7: #{dummy_forward.1} parent=0 // pred_check_branch
    %13 = sbr.rel (0) target = $region9
  $region8: #{dummy_forward.1} parent=0 // pred_region
    _
  $region9: #{dummy_forward.1} parent=0 // pred_fallthru
    _
  // Predicated region
  $region10: #{dummy_forward.1} parent=0 // pred_check
    _
  $region11: #{dummy_forward.1} parent=0 // pred_check_branch
    %15 = sbr.rel (0) target = $region13
  $region12: #{dummy_forward.1} parent=0 // pred_region
    _
  $region13: #{dummy_forward.1} parent=0 // pred_fallthru
    _

</llo_original>
